<compile_context>
chip_gen: v7x
topology: tpu7x:2x2x1
jax: 0.10.0
libtpu: 0.0.40
codegen_flags: <defaults>
</compile_context>

<pallas_src>
import jax
import jax.numpy as jnp
from jax.experimental import pallas as pl
from jax.experimental.pallas import tpu as pltpu


def _linear_attention_kernel(feat_ref, asp_ref, mask_ref, w_ref, b_ref,
                             wf_ref, wq_ref, bias_ref, out_ref):
    feat = feat_ref[...].astype(jnp.float32)                      # [nb, L, D]

    # logits[n, l] = feat[n, l, :] . wf_eff + asp[n, :] . wq_eff + bias_eff
    s_f = jnp.sum(feat * wf_ref[...][None, :, :], axis=-1)        # [nb, L]
    s_q = jnp.dot(asp_ref[...].astype(jnp.float32), wq_ref[...],
                  preferred_element_type=jnp.float32)             # [nb, 1]
    s_q = s_q + bias_ref[...]
    logits = s_f + s_q                                            # [nb, L]

    # mask_logits + numerically-stable softmax over L (all in f32).
    mask = mask_ref[...].astype(jnp.float32)
    logits = logits * mask + (1.0 - mask) * (-1e30)
    m = jnp.max(logits, axis=1, keepdims=True)
    e = jnp.exp(logits - m)
    denom = jnp.sum(e, axis=1, keepdims=True)
    attn = e / denom                                              # exact recip

    # ctx[n, d] = sum_l attn[n, l] * feat[n, l, d];  out = ctx @ w + b.
    ctx = jnp.sum(feat * attn[:, :, None], axis=1)                # [nb, D]
    out = jnp.dot(ctx, w_ref[...], preferred_element_type=jnp.float32)
    out_ref[...] = (out + b_ref[...]).astype(out_ref.dtype)


def _round_up(x, m):
    return ((x + m - 1) // m) * m


def _vmem_capacity_bytes():
    try:
        info = pltpu.get_tpu_info()
        cap = int(getattr(info, "vmem_capacity_bytes", 0))
        if cap > 0:
            return cap
    except Exception:
        pass
    return 64 * 1024 * 1024            # conservative default (v7x per-TC VMEM)


def _choose_block_n(N, L, D, feat_itemsize, budget_bytes):
    # Per-row working set: double-buffered feature tile (stream dtype) plus
    # ~one f32 slab worth of in-flight intermediates, plus small vectors.
    per_row = L * D * (2 * feat_itemsize + 4) + 64 * L + 16 * D + 1024
    fixed = 4 * (2 * D * D + 8 * D + 64)          # weights / biases (dbl-buf)
    avail = max(budget_bytes - fixed, per_row * 8)
    block_n = max(8, (avail // per_row) // 8 * 8)
    n8 = _round_up(N, 8)
    block_n = int(min(block_n, 512, n8))
    # Keep >=2 grid steps (no padding waste) when there is enough work so
    # both TensorCores on v7x get a share under dimension_semantics=parallel.
    if n8 >= 16 and block_n >= n8 and (n8 // 2) % 8 == 0:
        block_n = n8 // 2
    return block_n


def linear_attention(feature, aspect_v, dmask, w, b, w_fc, b_fc, *,
                     block_n=None, feature_dtype=None):
    """feature [N,L,D], aspect_v [N,D], dmask [N,L] (float 0/1 mask).

    w  [D, D]   linear weight in (in, out) orientation.  NOTE: torch
                nn.Linear stores weight as (out, in) and computes x @ W.T,
                so a real checkpoint must pass weight.T here (and w_fc as the
                fc weight transposed to [2D, 1]).
    b  [1, D]   linear bias.
    w_fc [2D,1], b_fc [1]   fc params ([:D] = feature half, [D:] = Q half).
    feature_dtype: optional streaming dtype for the feature slab (e.g.
                jnp.bfloat16); scores / softmax / accumulation stay f32.
    Returns out [N, D] float32.
    """
    N, L, D = feature.shape
    assert aspect_v.shape == (N, D) and dmask.shape == (N, L)
    assert w.shape == (D, D) and w_fc.shape == (2 * D, 1)

    f32 = jnp.float32
    w32 = w.astype(f32)
    b32 = jnp.reshape(b, (1, D)).astype(f32)
    wfc = w_fc.astype(f32)
    w_f = wfc[:D, :]                                   # [D, 1] feature half
    w_q = wfc[D:, :]                                   # [D, 1] query half

    # Host-side algebraic folding (exact):
    #   s_f = F @ w_f = feat @ (w @ w_f) + b @ w_f
    #   s_q = Q @ w_q = asp @ (w @ w @ w_q) + (b @ w + b) @ w_q
    wf_eff = (w32 @ w_f).reshape(1, D)                              # [1, D]
    wq_eff = w32 @ (w32 @ w_q)                                      # [D, 1]
    bias_eff = (b32 @ w_f) + ((b32 @ w32 + b32) @ w_q)              # [1, 1]
    bias_eff = bias_eff + jnp.asarray(b_fc, f32).reshape(1, 1)

    stream_dtype = (jnp.dtype(feature_dtype) if feature_dtype is not None
                    else jnp.dtype(feature.dtype))
    feature = feature.astype(stream_dtype)
    aspect_v = aspect_v.astype(f32)
    dmask = dmask.astype(f32)

    vmem_cap = _vmem_capacity_bytes()
    budget = int(vmem_cap * 0.70)
    if block_n is None:
        block_n = _choose_block_n(N, L, D, stream_dtype.itemsize, budget)
    block_n = max(8, _round_up(int(block_n), 8))

    n_pad = _round_up(N, block_n)
    if n_pad != N:
        feature = jnp.pad(feature, ((0, n_pad - N), (0, 0), (0, 0)))
        aspect_v = jnp.pad(aspect_v, ((0, n_pad - N), (0, 0)))
        dmask = jnp.pad(dmask, ((0, n_pad - N), (0, 0)))
    grid = (n_pad // block_n,)

    const2 = lambda i: (0, 0)
    out = pl.pallas_call(
        _linear_attention_kernel,
        grid=grid,
        in_specs=[
            pl.BlockSpec((block_n, L, D), lambda i: (i, 0, 0)),   # feature
            pl.BlockSpec((block_n, D), lambda i: (i, 0)),         # aspect_v
            pl.BlockSpec((block_n, L), lambda i: (i, 0)),         # dmask
            pl.BlockSpec((D, D), const2),                         # w (in,out)
            pl.BlockSpec((1, D), const2),                         # b
            pl.BlockSpec((1, D), const2),                         # wf_eff
            pl.BlockSpec((D, 1), const2),                         # wq_eff
            pl.BlockSpec((1, 1), const2),                         # bias_eff
        ],
        out_specs=pl.BlockSpec((block_n, D), lambda i: (i, 0)),
        out_shape=jax.ShapeDtypeStruct((n_pad, D), jnp.float32),
        compiler_params=pltpu.CompilerParams(
            dimension_semantics=("parallel",),
            vmem_limit_bytes=int(vmem_cap * 0.85)),
    )(feature, aspect_v, dmask, w32, b32, wf_eff, wq_eff, bias_eff)
    return out[:N]


def _reference(feature, aspect_v, dmask, w, b, w_fc, b_fc):
    """Pure-JAX mirror of the PyTorch forward, for verification."""
    q = aspect_v @ w + b                                   # [N, D]
    q = jnp.broadcast_to(q[:, None, :], feature.shape)     # expand_as(feature)
    q = q @ w + b                                          # linear applied again
    f = feature @ w + b                                    # [N, L, D]
    att = jnp.concatenate([f, q], axis=2) @ w_fc + b_fc    # [N, L, 1]
    m = dmask[:, :, None]
    att = att * m + (1.0 - m) * (-1e30)
    attn = jax.nn.softmax(att, axis=1)                     # softmax over L
    out = jnp.einsum('nld,nl->nd', f, attn[:, :, 0])       # bmm(f^T, attn)
    return out


if __name__ == "__main__":
    # Small shapes consistent with the module (in_dim == mem_dim is required
    # by the double application of self.linear / expand_as in forward()).
    N, L, D = 2, 8, 32

    key = jax.random.PRNGKey(0)
    k_feat, k_asp, k_w, k_b, k_wfc, k_bfc = jax.random.split(key, 6)

    feature = jax.random.normal(k_feat, (N, L, D), dtype=jnp.float32)
    aspect_v = jax.random.normal(k_asp, (N, D), dtype=jnp.float32)
    # Deterministic 0/1 float mask (valid lengths 6 and 8).
    lens = jnp.array([6, 8], dtype=jnp.int32)
    dmask = (jnp.arange(L)[None, :] < lens[:, None]).astype(jnp.float32)

    # Deterministic synthetic parameters (not a checkpoint load).
    w = 0.1 * jax.random.normal(k_w, (D, D), dtype=jnp.float32)      # (in, out)
    b = 0.1 * jax.random.normal(k_b, (1, D), dtype=jnp.float32)
    w_fc = 0.1 * jax.random.normal(k_wfc, (2 * D, 1), dtype=jnp.float32)
    b_fc = 0.1 * jax.random.normal(k_bfc, (1,), dtype=jnp.float32)

    ref = _reference(feature, aspect_v, dmask, w, b, w_fc, b_fc)

    # f32 path: restructure is algebraically exact, exact reciprocal -> tight.
    out = linear_attention(feature, aspect_v, dmask, w, b, w_fc, b_fc)
    out = jax.block_until_ready(out)
    assert out.shape == (N, D)
    assert jnp.allclose(out, ref, atol=1e-3, rtol=1e-3), \
        float(jnp.max(jnp.abs(out - ref)))

    # bf16 feature-streaming path (HBM-bandwidth optimization); softmax and
    # accumulation remain f32 inside the kernel.
    out_bf16 = linear_attention(feature, aspect_v, dmask, w, b, w_fc, b_fc,
                                feature_dtype=jnp.bfloat16)
    out_bf16 = jax.block_until_ready(out_bf16)
    assert jnp.allclose(out_bf16, ref, atol=3e-2, rtol=3e-2), \
        float(jnp.max(jnp.abs(out_bf16 - ref)))

    print("KERNEL_OK")
</pallas_src>

<mosaic_0001>
module attributes {stable_mosaic.version = 11 : i64} {
  func.func @_linear_attention_kernel(%arg0: i32, %arg1: memref<8x8x32xf32, #tpu.memory_space<vmem>>, %arg2: memref<8x32xf32, #tpu.memory_space<vmem>>, %arg3: memref<8x8xf32, #tpu.memory_space<vmem>>, %arg4: memref<32x32xf32, #tpu.memory_space<vmem>>, %arg5: memref<1x32xf32, #tpu.memory_space<vmem>>, %arg6: memref<1x32xf32, #tpu.memory_space<vmem>>, %arg7: memref<32x1xf32, #tpu.memory_space<vmem>>, %arg8: memref<1x1xf32, #tpu.memory_space<vmem>>, %arg9: memref<8x32xf32, #tpu.memory_space<vmem>>) attributes {dimension_semantics = [#tpu.dimension_semantics<parallel>], iteration_bounds = array<i64: 1>, scalar_prefetch = 0 : i64, scratch_operands = 0 : i64, tpu.core_type = #tpu.core_type<tc>, window_params = [{transform_indices = @transform_0, window_bounds = array<i64: 8, 8, 32>}, {transform_indices = @transform_1, window_bounds = array<i64: 8, 32>}, {transform_indices = @transform_2, window_bounds = array<i64: 8, 8>}, {pipeline_mode = #tpu.pipeline_mode<synchronous>, transform_indices = @transform_3, window_bounds = array<i64: 32, 32>}, {pipeline_mode = #tpu.pipeline_mode<synchronous>, transform_indices = @transform_4, window_bounds = array<i64: 1, 32>}, {pipeline_mode = #tpu.pipeline_mode<synchronous>, transform_indices = @transform_5, window_bounds = array<i64: 1, 32>}, {pipeline_mode = #tpu.pipeline_mode<synchronous>, transform_indices = @transform_6, window_bounds = array<i64: 32, 1>}, {pipeline_mode = #tpu.pipeline_mode<synchronous>, transform_indices = @transform_7, window_bounds = array<i64: 1, 1>}, {transform_indices = @transform_8, window_bounds = array<i64: 8, 32>}]} {
    %c0 = arith.constant 0 : index
    %c0_0 = arith.constant 0 : index
    %c0_1 = arith.constant 0 : index
    %0 = vector.load %arg1[%c0, %c0_0, %c0_1] : memref<8x8x32xf32, #tpu.memory_space<vmem>>, vector<8x8x32xf32>
    %c0_2 = arith.constant 0 : index
    %c0_3 = arith.constant 0 : index
    %1 = vector.load %arg6[%c0_2, %c0_3] : memref<1x32xf32, #tpu.memory_space<vmem>>, vector<1x32xf32>
    %2 = vector.shape_cast %1 : vector<1x32xf32> to vector<1x1x32xf32>
    %3 = vector.broadcast %2 : vector<1x1x32xf32> to vector<8x8x32xf32>
    %4 = arith.mulf %0, %3 : vector<8x8x32xf32>
    %cst = arith.constant dense<0.000000e+00> : vector<8x8xf32>
    %5 = vector.multi_reduction <add>, %4, %cst [2] : vector<8x8x32xf32> to vector<8x8xf32>
    %c0_4 = arith.constant 0 : index
    %c0_5 = arith.constant 0 : index
    %6 = vector.load %arg2[%c0_4, %c0_5] : memref<8x32xf32, #tpu.memory_space<vmem>>, vector<8x32xf32>
    %c0_6 = arith.constant 0 : index
    %c0_7 = arith.constant 0 : index
    %7 = vector.load %arg7[%c0_6, %c0_7] : memref<32x1xf32, #tpu.memory_space<vmem>>, vector<32x1xf32>
    %cst_8 = arith.constant dense<0.000000e+00> : vector<8x1xf32>
    %8 = tpu.matmul %6, %7, %cst_8 {dimension_numbers = #tpu.dot_dimension_numbers<[1], [0], [0], [1], [0, 0, 1, 1], [], []>} : vector<8x32xf32>, vector<32x1xf32>, vector<8x1xf32> -> vector<8x1xf32>
    %c0_9 = arith.constant 0 : index
    %c0_10 = arith.constant 0 : index
    %9 = vector.load %arg8[%c0_9, %c0_10] : memref<1x1xf32, #tpu.memory_space<vmem>>, vector<1x1xf32>
    %10 = vector.broadcast %9 : vector<1x1xf32> to vector<8x1xf32>
    %11 = arith.addf %8, %10 : vector<8x1xf32>
    %12 = vector.broadcast %11 : vector<8x1xf32> to vector<8x8xf32>
    %13 = arith.addf %5, %12 : vector<8x8xf32>
    %c0_11 = arith.constant 0 : index
    %c0_12 = arith.constant 0 : index
    %14 = vector.load %arg3[%c0_11, %c0_12] : memref<8x8xf32, #tpu.memory_space<vmem>>, vector<8x8xf32>
    %15 = arith.mulf %13, %14 : vector<8x8xf32>
    %cst_13 = arith.constant 1.000000e+00 : f32
    %16 = vector.broadcast %cst_13 : f32 to vector<8x8xf32>
    %17 = arith.subf %16, %14 : vector<8x8xf32>
    %cst_14 = arith.constant -1.000000e+30 : f32
    %18 = vector.broadcast %cst_14 : f32 to vector<8x8xf32>
    %19 = arith.mulf %17, %18 : vector<8x8xf32>
    %20 = arith.addf %15, %19 : vector<8x8xf32>
    %cst_15 = arith.constant dense<0xFF800000> : vector<8xf32>
    %21 = vector.multi_reduction <maximumf>, %20, %cst_15 [1] : vector<8x8xf32> to vector<8xf32>
    %22 = vector.shape_cast %21 : vector<8xf32> to vector<8x1xf32>
    %23 = vector.broadcast %22 : vector<8x1xf32> to vector<8x8xf32>
    %24 = arith.subf %20, %23 : vector<8x8xf32>
    %25 = math.exp %24 : vector<8x8xf32>
    %cst_16 = arith.constant dense<0.000000e+00> : vector<8xf32>
    %26 = vector.multi_reduction <add>, %25, %cst_16 [1] : vector<8x8xf32> to vector<8xf32>
    %27 = vector.shape_cast %26 : vector<8xf32> to vector<8x1xf32>
    %28 = vector.broadcast %27 : vector<8x1xf32> to vector<8x8xf32>
    %29 = arith.divf %25, %28 : vector<8x8xf32>
    %30 = vector.shape_cast %29 : vector<8x8xf32> to vector<8x8x1xf32>
    %31 = vector.broadcast %30 : vector<8x8x1xf32> to vector<8x8x32xf32>
    %32 = arith.mulf %0, %31 : vector<8x8x32xf32>
    %cst_17 = arith.constant dense<0.000000e+00> : vector<8x32xf32>
    %33 = vector.multi_reduction <add>, %32, %cst_17 [1] : vector<8x8x32xf32> to vector<8x32xf32>
    %c0_18 = arith.constant 0 : index
    %c0_19 = arith.constant 0 : index
    %34 = vector.load %arg4[%c0_18, %c0_19] : memref<32x32xf32, #tpu.memory_space<vmem>>, vector<32x32xf32>
    %cst_20 = arith.constant dense<0.000000e+00> : vector<8x32xf32>
    %35 = tpu.matmul %33, %34, %cst_20 {dimension_numbers = #tpu.dot_dimension_numbers<[1], [0], [0], [1], [0, 0, 1, 1], [], []>} : vector<8x32xf32>, vector<32x32xf32>, vector<8x32xf32> -> vector<8x32xf32>
    %c0_21 = arith.constant 0 : index
    %c0_22 = arith.constant 0 : index
    %36 = vector.load %arg5[%c0_21, %c0_22] : memref<1x32xf32, #tpu.memory_space<vmem>>, vector<1x32xf32>
    %37 = vector.broadcast %36 : vector<1x32xf32> to vector<8x32xf32>
    %38 = arith.addf %35, %37 : vector<8x32xf32>
    %c0_23 = arith.constant 0 : index
    %c0_24 = arith.constant 0 : index
    %39 = vector.load %arg9[%c0_23, %c0_24] : memref<8x32xf32, #tpu.memory_space<vmem>>, vector<8x32xf32>
    tpu.vector_store %arg9[%c0_23, %c0_24], %38 {strides = array<i32>} : memref<8x32xf32, #tpu.memory_space<vmem>>, vector<8x32xf32>,
    return
  }
  func.func @transform_0(%arg0: i32) -> (i32, i32, i32) {
    %c0_i32 = arith.constant 0 : i32
    %c0_i32_0 = arith.constant 0 : i32
    %c0_i32_1 = arith.constant 0 : i32
    return %arg0, %c0_i32, %c0_i32_0 : i32, i32, i32
  }
  func.func @transform_1(%arg0: i32) -> (i32, i32) {
    %c0_i32 = arith.constant 0 : i32
    %c0_i32_0 = arith.constant 0 : i32
    return %arg0, %c0_i32 : i32, i32
  }
  func.func @transform_2(%arg0: i32) -> (i32, i32) {
    %c0_i32 = arith.constant 0 : i32
    %c0_i32_0 = arith.constant 0 : i32
    return %arg0, %c0_i32 : i32, i32
  }
  func.func @transform_3(%arg0: i32) -> (i32, i32) {
    %c0_i32 = arith.constant 0 : i32
    %c0_i32_0 = arith.constant 0 : i32
    %c0_i32_1 = arith.constant 0 : i32
    return %c0_i32, %c0_i32_0 : i32, i32
  }
  func.func @transform_4(%arg0: i32) -> (i32, i32) {
    %c0_i32 = arith.constant 0 : i32
    %c0_i32_0 = arith.constant 0 : i32
    %c0_i32_1 = arith.constant 0 : i32
    return %c0_i32, %c0_i32_0 : i32, i32
  }
  func.func @transform_5(%arg0: i32) -> (i32, i32) {
    %c0_i32 = arith.constant 0 : i32
    %c0_i32_0 = arith.constant 0 : i32
    %c0_i32_1 = arith.constant 0 : i32
    return %c0_i32, %c0_i32_0 : i32, i32
  }
  func.func @transform_6(%arg0: i32) -> (i32, i32) {
    %c0_i32 = arith.constant 0 : i32
    %c0_i32_0 = arith.constant 0 : i32
    %c0_i32_1 = arith.constant 0 : i32
    return %c0_i32, %c0_i32_0 : i32, i32
  }
  func.func @transform_7(%arg0: i32) -> (i32, i32) {
    %c0_i32 = arith.constant 0 : i32
    %c0_i32_0 = arith.constant 0 : i32
    %c0_i32_1 = arith.constant 0 : i32
    return %c0_i32, %c0_i32_0 : i32, i32
  }
  func.func @transform_8(%arg0: i32) -> (i32, i32) {
    %c0_i32 = arith.constant 0 : i32
    %c0_i32_0 = arith.constant 0 : i32
    return %arg0, %c0_i32 : i32, i32
  }
}

</mosaic_0001>

<llo_original>
// kernel: tpu_custom_call.1
$region0: #{tpu_custom_call.1}
  #allocation0 [shape = 'u32[]', space=smem, size = 0x4, offset = 0x4, fixed_abs, tag = 'smem constant byte address 0x4 - core index']
  #allocation1 [shape = 'u32[144,128]{1,0:T(1,128)}', space=vmem, size = 0x12000, scoped, tag = 'internal scratch']
  #allocation2 [shape = 'f32[1,1]{1,0:T(1,128)S(1)}', space=vmem, size = 0x200, scoped, tag = 'scoped memory for tpu_custom_call.1']
  %s0 = inlined_call_operand.hbm [shape: f32[8,8,32], index: 0, kind: input, shape index: {}]
  %s1 = inlined_call_operand.vmem [shape: f32[8,32], index: 1, kind: input, shape index: {}]
  %s2 = inlined_call_operand.vmem [shape: f32[8,8], index: 2, kind: input, shape index: {}]
  %s3 = inlined_call_operand.vmem [shape: f32[32,32], index: 3, kind: input, shape index: {}]
  %s4 = inlined_call_operand.vmem [shape: f32[1,32], index: 4, kind: input, shape index: {}]
  %s5 = inlined_call_operand.vmem [shape: f32[1,32], index: 5, kind: input, shape index: {}]
  %s6 = inlined_call_operand.vmem [shape: f32[32,1], index: 6, kind: input, shape index: {}]
  %s7 = inlined_call_operand.<no memory space> [shape: f32[1,1], index: 7, kind: input, shape index: {}]
  %s8 = inlined_call_operand.hbm [shape: f32[8,32], index: 8, kind: output, shape index: {}]
  %s9 = sld [smem:[#allocation0]]
  $region46: #{tpu_custom_call.1} parent=0
    _
  %s11 = ssub.s32 1, %s9
  %s12 = scalar_select 0, %s11, %s9
  %v13 = vstv %s7
  %14 = vst [vmem:[#allocation2] sm:$0x1] %v13
  $region1: #{tpu_custom_call.1} parent=0
    #allocation3 [shape = 'u8[32768]{0}', space=vmem, size = 0x8000, scoped, tag = 'input window, operand 0, single buffered']
    #allocation4 [shape = 's32[1]{0}', space=sflag, size = 0x4, scoped, tag = 'scoped memory for tpu_custom_call.1']
    #allocation5 [shape = 's32[1]{0}', space=sflag, size = 0x4, scoped, tag = 'scoped memory for tpu_custom_call.1']
    #allocation6 [shape = 'u8[4096]{0}', space=vmem, size = 0x1000, scoped, tag = 'output window, operand 0, single buffered']
    %15 = vsyncpa [#allocation4], 0
    %16 = vsyncpa [#allocation5], 0
    // Predicated region
    $region2: #{tpu_custom_call.1} parent=1 // pred_check
      _
    $region3: #{tpu_custom_call.1} parent=1 // pred_check_branch
      %18 = sbr.rel (0) target = $region5
    $region4: #{tpu_custom_call.1} parent=1 // pred_region
      %s20 = ssub.s32 1024, 1024
      %21 = vsyncadd [#allocation4], %s20
      %s22 = sshll.u32 [#allocation3], 4
      %s23 = int_to_ptr.vmem [resolvable:$true] %s22
      %28 = dma.hbm_to_vmem [thread:$0]  %s0, 1024, %s23, [#allocation4], 128, 128, 8
    $region5: #{tpu_custom_call.1} parent=1 // pred_fallthru
      _
    // Predicated region
    $region6: #{tpu_custom_call.1} parent=1 // pred_check
      _
    $region7: #{tpu_custom_call.1} parent=1 // pred_check_branch
      %30 = sbr.rel (0) target = $region9
    $region8: #{tpu_custom_call.1} parent=1 // pred_region
      _
    $region9: #{tpu_custom_call.1} parent=1 // pred_fallthru
      _
    // Predicated region
    $region10: #{tpu_custom_call.1} parent=1 // pred_check
      _
    $region11: #{tpu_custom_call.1} parent=1 // pred_check_branch
      %32 = sbr.rel (0) target = $region13
    $region12: #{tpu_custom_call.1} parent=1 // pred_region
      _
    $region13: #{tpu_custom_call.1} parent=1 // pred_fallthru
      _
    // Predicated region
    $region14: #{tpu_custom_call.1} parent=1 // pred_check
      _
    $region15: #{tpu_custom_call.1} parent=1 // pred_check_branch
      %34 = sbr.rel (0) target = $region17
    $region16: #{tpu_custom_call.1} parent=1 // pred_region
      _
    $region17: #{tpu_custom_call.1} parent=1 // pred_fallthru
      _
    // Predicated region
    $region18: #{tpu_custom_call.1} parent=1 // pred_check
      _
    $region19: #{tpu_custom_call.1} parent=1 // pred_check_branch
      %36 = sbr.rel (0) target = $region21
    $region20: #{tpu_custom_call.1} parent=1 // pred_region
      _
    $region21: #{tpu_custom_call.1} parent=1 // pred_fallthru
      _
    // Predicated region
    $region22: #{tpu_custom_call.1} parent=1 // pred_check
      _
    $region23: #{tpu_custom_call.1} parent=1 // pred_check_branch
      %38 = sbr.rel (0) target = $region25
    $region24: #{tpu_custom_call.1} parent=1 // pred_region
      _
    $region25: #{tpu_custom_call.1} parent=1 // pred_fallthru
      _
    // Predicated region
    $region26: #{tpu_custom_call.1} parent=1 // pred_check
      _
    $region27: #{tpu_custom_call.1} parent=1 // pred_check_branch
      %40 = sbr.rel (0) target = $region29
    $region28: #{tpu_custom_call.1} parent=1 // pred_region
      _
    $region29: #{tpu_custom_call.1} parent=1 // pred_fallthru
      _
    // Predicated region
    $region30: #{tpu_custom_call.1} parent=1 // pred_check
      _
    $region31: #{tpu_custom_call.1} parent=1 // pred_check_branch
      %42 = sbr.rel (0) target = $region33
    $region32: #{tpu_custom_call.1} parent=1 // pred_region
      _
    $region33: #{tpu_custom_call.1} parent=1 // pred_fallthru
      _
    // Predicated region
    $region34: #{tpu_custom_call.1} parent=1 // pred_check
      _
    $region35: #{tpu_custom_call.1} parent=1 // pred_check_branch
      %44 = sbr.rel (0) target = $region37
    $region36: #{tpu_custom_call.1} parent=1 // pred_region
      %45 = dma.done [#allocation4], 1024
    $region37: #{tpu_custom_call.1} parent=1 // pred_fallthru
      _
    %v46 = vld [vmem:[#allocation3] sm:$0xff]
    %v47 = vld [vmem:[#allocation3 + $0x8] sm:$0xff]
    %v48 = vld [vmem:[#allocation3 + $0x10] sm:$0xff]
    %v49 = vld [vmem:[#allocation3 + $0x18] sm:$0xff]
    %v50 = vld [vmem:[#allocation3 + $0x20] sm:$0xff]
    %v51 = vld [vmem:[#allocation3 + $0x28] sm:$0xff]
    %v52 = vld [vmem:[#allocation3 + $0x30] sm:$0xff]
    %v53 = vld [vmem:[#allocation3 + $0x38] sm:$0xff]
    %v54 = vld [vmem:[%s5] sm:$0x1]
    %v56 = vlaneseq
    %v57 = vshrl.u32 %v56, 7
    %v58 = vsub.s32 0, %v57
    %v59 = vrot.slane %v54, %v58
    %v61 = vmul.f32 %v46, %v59
    %v62 = vmul.f32 %v47, %v59
    %v63 = vmul.f32 %v48, %v59
    %v64 = vmul.f32 %v49, %v59
    %v65 = vmul.f32 %v50, %v59
    %v66 = vmul.f32 %v51, %v59
    %v67 = vmul.f32 %v52, %v59
    %v68 = vmul.f32 %v53, %v59
    %vm69 = vcmask 261120
    %v70 = vsel %vm69, %v61, 0.0
    %71 = vadd.xlane.f32.xlu0 %v70
    %v72 = vpop.xlane.xlu0 %71
    %v73 = vsel %vm69, %v62, 0.0
    %74 = vadd.xlane.f32.xlu0 %v73
    %v75 = vpop.xlane.xlu0 %74
    %v76 = vsel %vm69, %v63, 0.0
    %77 = vadd.xlane.f32.xlu0 %v76
    %v78 = vpop.xlane.xlu0 %77
    %v79 = vsel %vm69, %v64, 0.0
    %80 = vadd.xlane.f32.xlu0 %v79
    %v81 = vpop.xlane.xlu0 %80
    %v82 = vsel %vm69, %v65, 0.0
    %83 = vadd.xlane.f32.xlu0 %v82
    %v84 = vpop.xlane.xlu0 %83
    %v85 = vsel %vm69, %v66, 0.0
    %86 = vadd.xlane.f32.xlu0 %v85
    %v87 = vpop.xlane.xlu0 %86
    %v88 = vsel %vm69, %v67, 0.0
    %89 = vadd.xlane.f32.xlu0 %v88
    %v90 = vpop.xlane.xlu0 %89
    %v91 = vsel %vm69, %v68, 0.0
    %92 = vadd.xlane.f32.xlu0 %v91
    %v93 = vpop.xlane.xlu0 %92
    %v94 = vld [vmem:[%s1] sm:$0xff]
    %v95 = vld [vmem:[%s6] sm:$0xff]
    %v96 = vld [vmem:[%s6 + $0x8] sm:$0xff]
    %v97 = vld [vmem:[%s6 + $0x10] sm:$0xff]
    %v98 = vld [vmem:[%s6 + $0x18] sm:$0xff]
    %v99 = vld [vmem:[#allocation2] sm:$0x1]
    %v101 = vlaneseq
    %v102 = vshrl.u32 %v101, 7
    %v103 = vsub.s32 0, %v102
    %v104 = vrot.slane %v99, %v103
    %v107 = vsel %vm69, %v94, 0
    %109 = vmatprep.subr.mxu0 0.0
    %110 = vmatpush1.msra.mxu0 %v95
    %111 = vmatprep.subr.mxu0 0.0
    %112 = vmatpush1.msra.mxu0 %v96
    %113 = vmatprep.subr.mxu0 0.0
    %114 = vmatpush1.msra.mxu0 %v97
    %115 = vmatprep.subr.mxu0 0.0
    %116 = vmatpush1.msra.mxu0 %v98
    %117 = vmatprep.subr.mxu0 0.0
    %118 = vmatpush1.msra.mxu0 0.0
    %119 = vmatprep.subr.mxu0 0.0
    %120 = vmatpush1.msra.mxu0 0.0
    %121 = vmatprep.subr.mxu0 0.0
    %122 = vmatpush1.msra.mxu0 0.0
    %123 = vmatprep.subr.mxu0 0.0
    %124 = vmatpush1.msra.mxu0 0.0
    %125 = vmatprep.subr.mxu0 0.0
    %126 = vmatpush1.msra.mxu0 0.0
    %127 = vmatprep.subr.mxu0 0.0
    %128 = vmatpush1.msra.mxu0 0.0
    %129 = vmatprep.subr.mxu0 0.0
    %130 = vmatpush1.msra.mxu0 0.0
    %131 = vmatprep.subr.mxu0 0.0
    %132 = vmatpush1.msra.mxu0 0.0
    %133 = vmatprep.subr.mxu0 0.0
    %134 = vmatpush1.msra.mxu0 0.0
    %135 = vmatprep.subr.mxu0 0.0
    %136 = vmatpush1.msra.mxu0 0.0
    %137 = vmatprep.subr.mxu0 0.0
    %138 = vmatpush1.msra.mxu0 0.0
    %139 = vmatprep.subr.mxu0 0.0
    %140 = vmatpush1.msra.mxu0 0.0
    %141 = vmatprep.subr.mxu0 0.0
    %142 = vmatpush1.msra.mxu0 0.0
    %143 = vmatprep.subr.mxu0 0.0
    %144 = vmatpush1.msra.mxu0 0.0
    %145 = vmatprep.subr.mxu0 0.0
    %146 = vmatpush1.msra.mxu0 0.0
    %147 = vmatprep.subr.mxu0 0.0
    %148 = vmatpush1.msra.mxu0 0.0
    %149 = vmatprep.subr.mxu0 0.0
    %150 = vmatpush1.msra.mxu0 0.0
    %151 = vmatprep.subr.mxu0 0.0
    %152 = vmatpush1.msra.mxu0 0.0
    %153 = vmatprep.subr.mxu0 0.0
    %154 = vmatpush1.msra.mxu0 0.0
    %155 = vmatprep.subr.mxu0 0.0
    %156 = vmatpush1.msra.mxu0 0.0
    %157 = vmatprep.subr.mxu0 0.0
    %158 = vmatpush1.msra.mxu0 0.0
    %159 = vmatprep.subr.mxu0 0.0
    %160 = vmatpush1.msra.mxu0 0.0
    %161 = vmatprep.subr.mxu0 0.0
    %162 = vmatpush1.msra.mxu0 0.0
    %163 = vmatprep.subr.mxu0 0.0
    %164 = vmatpush1.msra.mxu0 0.0
    %165 = vmatprep.subr.mxu0 0.0
    %166 = vmatpush1.msra.mxu0 0.0
    %167 = vmatprep.subr.mxu0 0.0
    %168 = vmatpush1.msra.mxu0 0.0
    %169 = vmatprep.subr.mxu0 0.0
    %170 = vmatpush1.msra.mxu0 0.0
    %171 = vmatprep.subr.mxu0 0.0
    %172 = vmatpush1.msra.mxu0 0.0
    %173 = vmatprep.mubr.f32.mxu0 0.0
    %174 = vmatmul.mubr.f32.gmra.mrb[0].mxu0 %v107
    %v175 = vpop.f32.mrb[0].mxu0
    %v176 = vadd.f32 %v104, %v175
    %v177 = vpop.f32.mrb[0].mxu0
    %178 = vdwg.mxu0
    %180 = vset.pattern.permute.xlu0 0
    %181 = vperm.xlu0 %180, %v176
    %v182 = vpop.permute.xlu0 %181
    %v183 = vlaneseq
    %v184 = vshrl.u32 %v183, 7
    %v185 = vsub.s32 0, %v184
    %v186 = vrot.slane %v182, %v185
    %v187 = vlaneseq
    %v188 = vshrl.u32 %v187, 7
    %v189 = vsub.s32 1, %v188
    %v190 = vrot.slane %v182, %v189
    %v191 = vlaneseq
    %v192 = vshrl.u32 %v191, 7
    %v193 = vsub.s32 2, %v192
    %v194 = vrot.slane %v182, %v193
    %v195 = vlaneseq
    %v196 = vshrl.u32 %v195, 7
    %v197 = vsub.s32 3, %v196
    %v198 = vrot.slane %v182, %v197
    %v199 = vlaneseq
    %v200 = vshrl.u32 %v199, 7
    %v201 = vsub.s32 4, %v200
    %v202 = vrot.slane %v182, %v201
    %v203 = vlaneseq
    %v204 = vshrl.u32 %v203, 7
    %v205 = vsub.s32 5, %v204
    %v206 = vrot.slane %v182, %v205
    %v207 = vlaneseq
    %v208 = vshrl.u32 %v207, 7
    %v209 = vsub.s32 6, %v208
    %v210 = vrot.slane %v182, %v209
    %v211 = vlaneseq
    %v212 = vshrl.u32 %v211, 7
    %v213 = vsub.s32 7, %v212
    %v214 = vrot.slane %v182, %v213
    %v223 = vadd.f32 %v72, %v186
    %v224 = vadd.f32 %v75, %v190
    %v225 = vadd.f32 %v78, %v194
    %v226 = vadd.f32 %v81, %v198
    %v227 = vadd.f32 %v84, %v202
    %v228 = vadd.f32 %v87, %v206
    %v229 = vadd.f32 %v90, %v210
    %v230 = vadd.f32 %v93, %v214
    %v231 = vld [vmem:[%s2] sm:$0xff]
    %v233 = vlaneseq
    %v234 = vshrl.u32 %v233, 7
    %v235 = vsub.s32 0, %v234
    %v236 = vrot.slane %v231, %v235
    %238 = vbcast.lane.b32.xlu0 %v236, 256
    %v239 = vpop.permute.xlu0 %238
    %v240 = vlaneseq
    %v241 = vshrl.u32 %v240, 7
    %v242 = vsub.s32 1, %v241
    %v243 = vrot.slane %v231, %v242
    %245 = vbcast.lane.b32.xlu0 %v243, 256
    %v246 = vpop.permute.xlu0 %245
    %v247 = vlaneseq
    %v248 = vshrl.u32 %v247, 7
    %v249 = vsub.s32 2, %v248
    %v250 = vrot.slane %v231, %v249
    %252 = vbcast.lane.b32.xlu0 %v250, 256
    %v253 = vpop.permute.xlu0 %252
    %v254 = vlaneseq
    %v255 = vshrl.u32 %v254, 7
    %v256 = vsub.s32 3, %v255
    %v257 = vrot.slane %v231, %v256
    %259 = vbcast.lane.b32.xlu0 %v257, 256
    %v260 = vpop.permute.xlu0 %259
    %v261 = vlaneseq
    %v262 = vshrl.u32 %v261, 7
    %v263 = vsub.s32 4, %v262
    %v264 = vrot.slane %v231, %v263
    %266 = vbcast.lane.b32.xlu0 %v264, 256
    %v267 = vpop.permute.xlu0 %266
    %v268 = vlaneseq
    %v269 = vshrl.u32 %v268, 7
    %v270 = vsub.s32 5, %v269
    %v271 = vrot.slane %v231, %v270
    %273 = vbcast.lane.b32.xlu0 %v271, 256
    %v274 = vpop.permute.xlu0 %273
    %v275 = vlaneseq
    %v276 = vshrl.u32 %v275, 7
    %v277 = vsub.s32 6, %v276
    %v278 = vrot.slane %v231, %v277
    %280 = vbcast.lane.b32.xlu0 %v278, 256
    %v281 = vpop.permute.xlu0 %280
    %v282 = vlaneseq
    %v283 = vshrl.u32 %v282, 7
    %v284 = vsub.s32 7, %v283
    %v285 = vrot.slane %v231, %v284
    %287 = vbcast.lane.b32.xlu0 %v285, 256
    %v288 = vpop.permute.xlu0 %287
    %v297 = vmul.f32 %v223, %v239
    %v298 = vmul.f32 %v224, %v246
    %v299 = vmul.f32 %v225, %v253
    %v300 = vmul.f32 %v226, %v260
    %v301 = vmul.f32 %v227, %v267
    %v302 = vmul.f32 %v228, %v274
    %v303 = vmul.f32 %v229, %v281
    %v304 = vmul.f32 %v230, %v288
    %v305 = vsub.f32 1.0, %v231
    %v306 = vmul.f32 %v305, -1e+30
    %v308 = vlaneseq
    %v309 = vshrl.u32 %v308, 7
    %v310 = vsub.s32 0, %v309
    %v311 = vrot.slane %v306, %v310
    %313 = vbcast.lane.b32.xlu0 %v311, 256
    %v314 = vpop.permute.xlu0 %313
    %v315 = vlaneseq
    %v316 = vshrl.u32 %v315, 7
    %v317 = vsub.s32 1, %v316
    %v318 = vrot.slane %v306, %v317
    %320 = vbcast.lane.b32.xlu0 %v318, 256
    %v321 = vpop.permute.xlu0 %320
    %v322 = vlaneseq
    %v323 = vshrl.u32 %v322, 7
    %v324 = vsub.s32 2, %v323
    %v325 = vrot.slane %v306, %v324
    %327 = vbcast.lane.b32.xlu0 %v325, 256
    %v328 = vpop.permute.xlu0 %327
    %v329 = vlaneseq
    %v330 = vshrl.u32 %v329, 7
    %v331 = vsub.s32 3, %v330
    %v332 = vrot.slane %v306, %v331
    %334 = vbcast.lane.b32.xlu0 %v332, 256
    %v335 = vpop.permute.xlu0 %334
    %v336 = vlaneseq
    %v337 = vshrl.u32 %v336, 7
    %v338 = vsub.s32 4, %v337
    %v339 = vrot.slane %v306, %v338
    %341 = vbcast.lane.b32.xlu0 %v339, 256
    %v342 = vpop.permute.xlu0 %341
    %v343 = vlaneseq
    %v344 = vshrl.u32 %v343, 7
    %v345 = vsub.s32 5, %v344
    %v346 = vrot.slane %v306, %v345
    %348 = vbcast.lane.b32.xlu0 %v346, 256
    %v349 = vpop.permute.xlu0 %348
    %v350 = vlaneseq
    %v351 = vshrl.u32 %v350, 7
    %v352 = vsub.s32 6, %v351
    %v353 = vrot.slane %v306, %v352
    %355 = vbcast.lane.b32.xlu0 %v353, 256
    %v356 = vpop.permute.xlu0 %355
    %v357 = vlaneseq
    %v358 = vshrl.u32 %v357, 7
    %v359 = vsub.s32 7, %v358
    %v360 = vrot.slane %v306, %v359
    %362 = vbcast.lane.b32.xlu0 %v360, 256
    %v363 = vpop.permute.xlu0 %362
    %v372 = vadd.f32 %v297, %v314
    %v373 = vadd.f32 %v298, %v321
    %v374 = vadd.f32 %v299, %v328
    %v375 = vadd.f32 %v300, %v335
    %v376 = vadd.f32 %v301, %v342
    %v377 = vadd.f32 %v302, %v349
    %v378 = vadd.f32 %v303, %v356
    %v379 = vadd.f32 %v304, %v363
    %388 = vset.pattern.permute.xlu0 0
    %389 = vperm.xlu0 %388, %v372
    %v390 = vpop.permute.xlu0 %389
    %391 = vset.pattern.permute.xlu0 0
    %392 = vperm.xlu0 %391, %v373
    %v393 = vpop.permute.xlu0 %392
    %394 = vset.pattern.permute.xlu0 0
    %395 = vperm.xlu0 %394, %v374
    %v396 = vpop.permute.xlu0 %395
    %397 = vset.pattern.permute.xlu0 0
    %398 = vperm.xlu0 %397, %v375
    %v399 = vpop.permute.xlu0 %398
    %400 = vset.pattern.permute.xlu0 0
    %401 = vperm.xlu0 %400, %v376
    %v402 = vpop.permute.xlu0 %401
    %403 = vset.pattern.permute.xlu0 0
    %404 = vperm.xlu0 %403, %v377
    %v405 = vpop.permute.xlu0 %404
    %406 = vset.pattern.permute.xlu0 0
    %407 = vperm.xlu0 %406, %v378
    %v408 = vpop.permute.xlu0 %407
    %409 = vset.pattern.permute.xlu0 0
    %410 = vperm.xlu0 %409, %v379
    %v411 = vpop.permute.xlu0 %410
    %v412 = vlaneseq
    %v413 = vand.u32 %v412, 127
    %v414 = vlaneseq
    %v415 = vshrl.u32 %v414, 7
    %v416 = vsub.s32 %v413, %v415
    %v417 = vrot.slane %v390, %v416
    %v418 = vlaneseq
    %v419 = vshrl.u32 %v418, 7
    %v420 = vsub.s32 %v413, %v419
    %v421 = vrot.slane %v393, %v420
    %v422 = vlaneseq
    %v423 = vshrl.u32 %v422, 7
    %v424 = vsub.s32 %v413, %v423
    %v425 = vrot.slane %v396, %v424
    %v426 = vlaneseq
    %v427 = vshrl.u32 %v426, 7
    %v428 = vsub.s32 %v413, %v427
    %v429 = vrot.slane %v399, %v428
    %v430 = vlaneseq
    %v431 = vshrl.u32 %v430, 7
    %v432 = vsub.s32 %v413, %v431
    %v433 = vrot.slane %v402, %v432
    %v434 = vlaneseq
    %v435 = vshrl.u32 %v434, 7
    %v436 = vsub.s32 %v413, %v435
    %v437 = vrot.slane %v405, %v436
    %v438 = vlaneseq
    %v439 = vshrl.u32 %v438, 7
    %v440 = vsub.s32 %v413, %v439
    %v441 = vrot.slane %v408, %v440
    %v442 = vlaneseq
    %v443 = vshrl.u32 %v442, 7
    %v444 = vsub.s32 %v413, %v443
    %v445 = vrot.slane %v411, %v444
    %vm446 = vcmask 1041409
    %v447 = vsel %vm446, %v421, %v417
    %vm448 = vcmask 1042434
    %v449 = vsel %vm448, %v425, %v447
    %vm450 = vcmask 1043459
    %v451 = vsel %vm450, %v429, %v449
    %vm452 = vcmask 1044484
    %v453 = vsel %vm452, %v433, %v451
    %vm454 = vcmask 1045509
    %v455 = vsel %vm454, %v437, %v453
    %vm456 = vcmask 1046534
    %v457 = vsel %vm456, %v441, %v455
    %vm458 = vcmask 1047559
    %v459 = vsel %vm458, %v445, %v457
    %vm461 = vcmask 64512
    %v462 = vsel %vm461, %v459, -inf
    %463 = vmax.xlane.f32.xlu0 %v462
    %v464 = vpop.xlane.xlu0 %463
    %v466 = vlaneseq
    %v467 = vshrl.u32 %v466, 7
    %v468 = vsub.s32 0, %v467
    %v469 = vrot.slane %v464, %v468
    %v470 = vlaneseq
    %v471 = vshrl.u32 %v470, 7
    %v472 = vsub.s32 1, %v471
    %v473 = vrot.slane %v464, %v472
    %v474 = vlaneseq
    %v475 = vshrl.u32 %v474, 7
    %v476 = vsub.s32 2, %v475
    %v477 = vrot.slane %v464, %v476
    %v478 = vlaneseq
    %v479 = vshrl.u32 %v478, 7
    %v480 = vsub.s32 3, %v479
    %v481 = vrot.slane %v464, %v480
    %v482 = vlaneseq
    %v483 = vshrl.u32 %v482, 7
    %v484 = vsub.s32 4, %v483
    %v485 = vrot.slane %v464, %v484
    %v486 = vlaneseq
    %v487 = vshrl.u32 %v486, 7
    %v488 = vsub.s32 5, %v487
    %v489 = vrot.slane %v464, %v488
    %v490 = vlaneseq
    %v491 = vshrl.u32 %v490, 7
    %v492 = vsub.s32 6, %v491
    %v493 = vrot.slane %v464, %v492
    %v494 = vlaneseq
    %v495 = vshrl.u32 %v494, 7
    %v496 = vsub.s32 7, %v495
    %v497 = vrot.slane %v464, %v496
    %v506 = vsub.f32 %v372, %v469
    %v507 = vsub.f32 %v373, %v473
    %v508 = vsub.f32 %v374, %v477
    %v509 = vsub.f32 %v375, %v481
    %v510 = vsub.f32 %v376, %v485
    %v511 = vsub.f32 %v377, %v489
    %v512 = vsub.f32 %v378, %v493
    %v513 = vsub.f32 %v379, %v497
    %v514 = vmul.f32 %v506, 1.442695
    %v515 = vpow.pop %v514
    %v516 = vmul.f32 %v507, 1.442695
    %v517 = vpow.pop %v516
    %v518 = vmul.f32 %v508, 1.442695
    %v519 = vpow.pop %v518
    %v520 = vmul.f32 %v509, 1.442695
    %v521 = vpow.pop %v520
    %v522 = vmul.f32 %v510, 1.442695
    %v523 = vpow.pop %v522
    %v524 = vmul.f32 %v511, 1.442695
    %v525 = vpow.pop %v524
    %v526 = vmul.f32 %v512, 1.442695
    %v527 = vpow.pop %v526
    %v528 = vmul.f32 %v513, 1.442695
    %v529 = vpow.pop %v528
    %538 = vset.pattern.permute.xlu0 0
    %539 = vperm.xlu0 %538, %v515
    %v540 = vpop.permute.xlu0 %539
    %541 = vset.pattern.permute.xlu0 0
    %542 = vperm.xlu0 %541, %v517
    %v543 = vpop.permute.xlu0 %542
    %544 = vset.pattern.permute.xlu0 0
    %545 = vperm.xlu0 %544, %v519
    %v546 = vpop.permute.xlu0 %545
    %547 = vset.pattern.permute.xlu0 0
    %548 = vperm.xlu0 %547, %v521
    %v549 = vpop.permute.xlu0 %548
    %550 = vset.pattern.permute.xlu0 0
    %551 = vperm.xlu0 %550, %v523
    %v552 = vpop.permute.xlu0 %551
    %553 = vset.pattern.permute.xlu0 0
    %554 = vperm.xlu0 %553, %v525
    %v555 = vpop.permute.xlu0 %554
    %556 = vset.pattern.permute.xlu0 0
    %557 = vperm.xlu0 %556, %v527
    %v558 = vpop.permute.xlu0 %557
    %559 = vset.pattern.permute.xlu0 0
    %560 = vperm.xlu0 %559, %v529
    %v561 = vpop.permute.xlu0 %560
    %v562 = vlaneseq
    %v563 = vshrl.u32 %v562, 7
    %v564 = vsub.s32 %v413, %v563
    %v565 = vrot.slane %v540, %v564
    %v566 = vlaneseq
    %v567 = vshrl.u32 %v566, 7
    %v568 = vsub.s32 %v413, %v567
    %v569 = vrot.slane %v543, %v568
    %v570 = vlaneseq
    %v571 = vshrl.u32 %v570, 7
    %v572 = vsub.s32 %v413, %v571
    %v573 = vrot.slane %v546, %v572
    %v574 = vlaneseq
    %v575 = vshrl.u32 %v574, 7
    %v576 = vsub.s32 %v413, %v575
    %v577 = vrot.slane %v549, %v576
    %v578 = vlaneseq
    %v579 = vshrl.u32 %v578, 7
    %v580 = vsub.s32 %v413, %v579
    %v581 = vrot.slane %v552, %v580
    %v582 = vlaneseq
    %v583 = vshrl.u32 %v582, 7
    %v584 = vsub.s32 %v413, %v583
    %v585 = vrot.slane %v555, %v584
    %v586 = vlaneseq
    %v587 = vshrl.u32 %v586, 7
    %v588 = vsub.s32 %v413, %v587
    %v589 = vrot.slane %v558, %v588
    %v590 = vlaneseq
    %v591 = vshrl.u32 %v590, 7
    %v592 = vsub.s32 %v413, %v591
    %v593 = vrot.slane %v561, %v592
    %v594 = vsel %vm446, %v569, %v565
    %v595 = vsel %vm448, %v573, %v594
    %v596 = vsel %vm450, %v577, %v595
    %v597 = vsel %vm452, %v581, %v596
    %v598 = vsel %vm454, %v585, %v597
    %v599 = vsel %vm456, %v589, %v598
    %v600 = vsel %vm458, %v593, %v599
    %v602 = vsel %vm461, %v600, 0.0
    %603 = vadd.xlane.f32.xlu0 %v602
    %v604 = vpop.xlane.xlu0 %603
    %v606 = vlaneseq
    %v607 = vshrl.u32 %v606, 7
    %v608 = vsub.s32 0, %v607
    %v609 = vrot.slane %v604, %v608
    %v610 = vlaneseq
    %v611 = vshrl.u32 %v610, 7
    %v612 = vsub.s32 1, %v611
    %v613 = vrot.slane %v604, %v612
    %v614 = vlaneseq
    %v615 = vshrl.u32 %v614, 7
    %v616 = vsub.s32 2, %v615
    %v617 = vrot.slane %v604, %v616
    %v618 = vlaneseq
    %v619 = vshrl.u32 %v618, 7
    %v620 = vsub.s32 3, %v619
    %v621 = vrot.slane %v604, %v620
    %v622 = vlaneseq
    %v623 = vshrl.u32 %v622, 7
    %v624 = vsub.s32 4, %v623
    %v625 = vrot.slane %v604, %v624
    %v626 = vlaneseq
    %v627 = vshrl.u32 %v626, 7
    %v628 = vsub.s32 5, %v627
    %v629 = vrot.slane %v604, %v628
    %v630 = vlaneseq
    %v631 = vshrl.u32 %v630, 7
    %v632 = vsub.s32 6, %v631
    %v633 = vrot.slane %v604, %v632
    %v634 = vlaneseq
    %v635 = vshrl.u32 %v634, 7
    %v636 = vsub.s32 7, %v635
    %v637 = vrot.slane %v604, %v636
    %v646 = vrcp.pop %v609
    %v647 = vmul.f32 %v515, %v646
    %v648 = vrcp.pop %v613
    %v649 = vmul.f32 %v517, %v648
    %v650 = vrcp.pop %v617
    %v651 = vmul.f32 %v519, %v650
    %v652 = vrcp.pop %v621
    %v653 = vmul.f32 %v521, %v652
    %v654 = vrcp.pop %v625
    %v655 = vmul.f32 %v523, %v654
    %v656 = vrcp.pop %v629
    %v657 = vmul.f32 %v525, %v656
    %v658 = vrcp.pop %v633
    %v659 = vmul.f32 %v527, %v658
    %v660 = vrcp.pop %v637
    %v661 = vmul.f32 %v529, %v660
    %663 = vset.pattern.permute.xlu0 0
    %664 = vperm.xlu0 %663, %v647
    %v665 = vpop.permute.xlu0 %664
    %668 = vset.pattern.permute.xlu0 0
    %669 = vperm.xlu0 %668, %v649
    %v670 = vpop.permute.xlu0 %669
    %673 = vset.pattern.permute.xlu0 0
    %674 = vperm.xlu0 %673, %v651
    %v675 = vpop.permute.xlu0 %674
    %678 = vset.pattern.permute.xlu0 0
    %679 = vperm.xlu0 %678, %v653
    %v680 = vpop.permute.xlu0 %679
    %683 = vset.pattern.permute.xlu0 0
    %684 = vperm.xlu0 %683, %v655
    %v685 = vpop.permute.xlu0 %684
    %688 = vset.pattern.permute.xlu0 0
    %689 = vperm.xlu0 %688, %v657
    %v690 = vpop.permute.xlu0 %689
    %693 = vset.pattern.permute.xlu0 0
    %694 = vperm.xlu0 %693, %v659
    %v695 = vpop.permute.xlu0 %694
    %698 = vset.pattern.permute.xlu0 0
    %699 = vperm.xlu0 %698, %v661
    %v700 = vpop.permute.xlu0 %699
    %v702 = vmul.f32 %v46, %v665
    %v703 = vmul.f32 %v47, %v670
    %v704 = vmul.f32 %v48, %v675
    %v705 = vmul.f32 %v49, %v680
    %v706 = vmul.f32 %v50, %v685
    %v707 = vmul.f32 %v51, %v690
    %v708 = vmul.f32 %v52, %v695
    %v709 = vmul.f32 %v53, %v700
    %v710 = vsel %vm69, %v702, 0.0
    %v711 = vrot.slane %v710, 4
    %v712 = vadd.f32 %v710, %v711
    %v713 = vrot.slane %v712, 2
    %v714 = vadd.f32 %v712, %v713
    %v715 = vrot.slane %v714, 1
    %v716 = vadd.f32 %v714, %v715
    %v717 = vsel %vm69, %v703, 0.0
    %v718 = vrot.slane %v717, 4
    %v719 = vadd.f32 %v717, %v718
    %v720 = vrot.slane %v719, 2
    %v721 = vadd.f32 %v719, %v720
    %v722 = vrot.slane %v721, 1
    %v723 = vadd.f32 %v721, %v722
    %v724 = vsel %vm69, %v704, 0.0
    %v725 = vrot.slane %v724, 4
    %v726 = vadd.f32 %v724, %v725
    %v727 = vrot.slane %v726, 2
    %v728 = vadd.f32 %v726, %v727
    %v729 = vrot.slane %v728, 1
    %v730 = vadd.f32 %v728, %v729
    %v731 = vsel %vm69, %v705, 0.0
    %v732 = vrot.slane %v731, 4
    %v733 = vadd.f32 %v731, %v732
    %v734 = vrot.slane %v733, 2
    %v735 = vadd.f32 %v733, %v734
    %v736 = vrot.slane %v735, 1
    %v737 = vadd.f32 %v735, %v736
    %v738 = vsel %vm69, %v706, 0.0
    %v739 = vrot.slane %v738, 4
    %v740 = vadd.f32 %v738, %v739
    %v741 = vrot.slane %v740, 2
    %v742 = vadd.f32 %v740, %v741
    %v743 = vrot.slane %v742, 1
    %v744 = vadd.f32 %v742, %v743
    %v745 = vsel %vm69, %v707, 0.0
    %v746 = vrot.slane %v745, 4
    %v747 = vadd.f32 %v745, %v746
    %v748 = vrot.slane %v747, 2
    %v749 = vadd.f32 %v747, %v748
    %v750 = vrot.slane %v749, 1
    %v751 = vadd.f32 %v749, %v750
    %v752 = vsel %vm69, %v708, 0.0
    %v753 = vrot.slane %v752, 4
    %v754 = vadd.f32 %v752, %v753
    %v755 = vrot.slane %v754, 2
    %v756 = vadd.f32 %v754, %v755
    %v757 = vrot.slane %v756, 1
    %v758 = vadd.f32 %v756, %v757
    %v759 = vsel %vm69, %v709, 0.0
    %v760 = vrot.slane %v759, 4
    %v761 = vadd.f32 %v759, %v760
    %v762 = vrot.slane %v761, 2
    %v763 = vadd.f32 %v761, %v762
    %v764 = vrot.slane %v763, 1
    %v765 = vadd.f32 %v763, %v764
    %v766 = vld [vmem:[%s3] sm:$0xff]
    %v767 = vld [vmem:[%s3 + $0x8] sm:$0xff]
    %v768 = vld [vmem:[%s3 + $0x10] sm:$0xff]
    %v769 = vld [vmem:[%s3 + $0x18] sm:$0xff]
    %v770 = vld [vmem:[%s4] sm:$0x1]
    %v772 = vlaneseq
    %v773 = vshrl.u32 %v772, 7
    %v774 = vsub.s32 0, %v773
    %v775 = vrot.slane %v770, %v774
    %v785 = vsel %vm446, %v723, %v716
    %v786 = vsel %vm448, %v730, %v785
    %v787 = vsel %vm450, %v737, %v786
    %v788 = vsel %vm452, %v744, %v787
    %v789 = vsel %vm454, %v751, %v788
    %v790 = vsel %vm456, %v758, %v789
    %v791 = vsel %vm458, %v765, %v790
    %v792 = vsel %vm69, %v791, 0
    %794 = vmatprep.subr.mxu0 0.0
    %795 = vmatpush1.msra.mxu0 %v766
    %796 = vmatprep.subr.mxu0 0.0
    %797 = vmatpush1.msra.mxu0 %v767
    %798 = vmatprep.subr.mxu0 0.0
    %799 = vmatpush1.msra.mxu0 %v768
    %800 = vmatprep.subr.mxu0 0.0
    %801 = vmatpush1.msra.mxu0 %v769
    %802 = vmatprep.subr.mxu0 0.0
    %803 = vmatpush1.msra.mxu0 0.0
    %804 = vmatprep.subr.mxu0 0.0
    %805 = vmatpush1.msra.mxu0 0.0
    %806 = vmatprep.subr.mxu0 0.0
    %807 = vmatpush1.msra.mxu0 0.0
    %808 = vmatprep.subr.mxu0 0.0
    %809 = vmatpush1.msra.mxu0 0.0
    %810 = vmatprep.subr.mxu0 0.0
    %811 = vmatpush1.msra.mxu0 0.0
    %812 = vmatprep.subr.mxu0 0.0
    %813 = vmatpush1.msra.mxu0 0.0
    %814 = vmatprep.subr.mxu0 0.0
    %815 = vmatpush1.msra.mxu0 0.0
    %816 = vmatprep.subr.mxu0 0.0
    %817 = vmatpush1.msra.mxu0 0.0
    %818 = vmatprep.subr.mxu0 0.0
    %819 = vmatpush1.msra.mxu0 0.0
    %820 = vmatprep.subr.mxu0 0.0
    %821 = vmatpush1.msra.mxu0 0.0
    %822 = vmatprep.subr.mxu0 0.0
    %823 = vmatpush1.msra.mxu0 0.0
    %824 = vmatprep.subr.mxu0 0.0
    %825 = vmatpush1.msra.mxu0 0.0
    %826 = vmatprep.subr.mxu0 0.0
    %827 = vmatpush1.msra.mxu0 0.0
    %828 = vmatprep.subr.mxu0 0.0
    %829 = vmatpush1.msra.mxu0 0.0
    %830 = vmatprep.subr.mxu0 0.0
    %831 = vmatpush1.msra.mxu0 0.0
    %832 = vmatprep.subr.mxu0 0.0
    %833 = vmatpush1.msra.mxu0 0.0
    %834 = vmatprep.subr.mxu0 0.0
    %835 = vmatpush1.msra.mxu0 0.0
    %836 = vmatprep.subr.mxu0 0.0
    %837 = vmatpush1.msra.mxu0 0.0
    %838 = vmatprep.subr.mxu0 0.0
    %839 = vmatpush1.msra.mxu0 0.0
    %840 = vmatprep.subr.mxu0 0.0
    %841 = vmatpush1.msra.mxu0 0.0
    %842 = vmatprep.subr.mxu0 0.0
    %843 = vmatpush1.msra.mxu0 0.0
    %844 = vmatprep.subr.mxu0 0.0
    %845 = vmatpush1.msra.mxu0 0.0
    %846 = vmatprep.subr.mxu0 0.0
    %847 = vmatpush1.msra.mxu0 0.0
    %848 = vmatprep.subr.mxu0 0.0
    %849 = vmatpush1.msra.mxu0 0.0
    %850 = vmatprep.subr.mxu0 0.0
    %851 = vmatpush1.msra.mxu0 0.0
    %852 = vmatprep.subr.mxu0 0.0
    %853 = vmatpush1.msra.mxu0 0.0
    %854 = vmatprep.subr.mxu0 0.0
    %855 = vmatpush1.msra.mxu0 0.0
    %856 = vmatprep.subr.mxu0 0.0
    %857 = vmatpush1.msra.mxu0 0.0
    %858 = vmatprep.mubr.f32.mxu0 0.0
    %859 = vmatmul.mubr.f32.gmra.mrb[0].mxu0 %v792
    %v860 = vpop.f32.mrb[0].mxu0
    %v861 = vadd.f32 %v775, %v860
    %v862 = vpop.f32.mrb[0].mxu0
    %863 = vdwg.mxu0
    %864 = vst.msk [vmem:[#allocation6] sm:$0xff] %vm69, %v861
    // Predicated region
    $region38: #{tpu_custom_call.1} parent=1 // pred_check
      _
    $region39: #{tpu_custom_call.1} parent=1 // pred_check_branch
      %866 = sbr.rel (0) target = $region41
    $region40: #{tpu_custom_call.1} parent=1 // pred_region
      %s868 = ssub.s32 128, 128
      %869 = vsyncadd [#allocation5], %s868
      %s871 = sshll.u32 [#allocation6], 4
      %s872 = int_to_ptr.vmem [resolvable:$true] %s871
      %874 = dma.vmem_to_hbm [thread:$0]  %s872, 128, %s8, [#allocation5]
    $region41: #{tpu_custom_call.1} parent=1 // pred_fallthru
      _
    // Predicated region
    $region42: #{tpu_custom_call.1} parent=1 // pred_check
      _
    $region43: #{tpu_custom_call.1} parent=1 // pred_check_branch
      %876 = sbr.rel (0) target = $region45
    $region44: #{tpu_custom_call.1} parent=1 // pred_region
      %877 = dma.done [#allocation5], 128
    $region45: #{tpu_custom_call.1} parent=1 // pred_fallthru
      _
    %878 = vsyncpa [#allocation4], 1
    %879 = vsyncpa [#allocation5], 1

</llo_original>
